<compile_context>
chip_gen: v7x
topology: tpu7x:2x2x1
jax: 0.10.0
libtpu: 0.0.40
codegen_flags: <defaults>
</compile_context>

<pallas_src>
import functools
from math import sqrt

import jax
import jax.numpy as jnp
from jax import lax
from jax.experimental import pallas as pl
from jax.experimental.pallas import tpu as pltpu

_VMEM_LIMIT_BYTES = 48 * 1024 * 1024   # scoped-VMEM cap (fits v7x's 64 MiB)
_ROW_TILE_BUDGET = 24 * 1024 * 1024    # budget for double-buffered row tiles


def _round_up(x, m):
    return (x + m - 1) // m * m


def _row_tile(rows, bytes_per_row, requested=512):
    """Largest multiple-of-8 row tile that keeps double-buffered tiles in budget."""
    cap = max(8, (_ROW_TILE_BUDGET // max(1, 2 * bytes_per_row)) // 8 * 8)
    return max(8, min(requested, cap, _round_up(rows, 8)))


def _cparams(*sem):
    return pltpu.CompilerParams(dimension_semantics=sem,
                                vmem_limit_bytes=_VMEM_LIMIT_BYTES)


# ---------------------------------------------------------------------------
# Kernel 1: fused matmul + bias (used for the concatenated Q/K/V projection)
# ---------------------------------------------------------------------------
def _linear_kernel(x_ref, w_ref, b_ref, o_ref):
    acc = jnp.dot(x_ref[...].astype(jnp.float32), w_ref[...].astype(jnp.float32),
                  preferred_element_type=jnp.float32)
    o_ref[...] = (acc + b_ref[...].astype(jnp.float32)).astype(o_ref.dtype)


def _linear(x2, w, b, *, block_rows=512):
    M, K = x2.shape
    N = w.shape[1]
    tm = _row_tile(M, (K + N) * 4, block_rows)
    Mp = _round_up(M, tm)
    if Mp != M:
        x2 = jnp.pad(x2, ((0, Mp - M), (0, 0)))
    out = pl.pallas_call(
        _linear_kernel,
        out_shape=jax.ShapeDtypeStruct((Mp, N), x2.dtype),
        grid=(Mp // tm,),
        in_specs=[
            pl.BlockSpec((tm, K), lambda i: (i, 0)),
            pl.BlockSpec((K, N), lambda i: (0, 0)),
            pl.BlockSpec((1, N), lambda i: (0, 0)),
        ],
        out_specs=pl.BlockSpec((tm, N), lambda i: (i, 0)),
        compiler_params=_cparams("parallel"),
    )(x2, w, b.reshape(1, N))
    return out[:M]


# ---------------------------------------------------------------------------
# Kernel 2: attention for one batch element, all heads in one grid step.
# Heads are unrolled (static Python loop); each head's context is written to
# its lane-slab of the (S, n_head*key_size) output block, which is exactly the
# PyTorch "flatten(2,3)" context layout.
# ---------------------------------------------------------------------------
def _attn_kernel(q_ref, k_ref, v_ref, m_ref, o_ref, *, scale):
    n_head, _, key_size = q_ref.shape
    m = m_ref[...]                                        # (1, S), 1.0 = keep
    for h in range(n_head):
        q = q_ref[h].astype(jnp.float32)                  # (S, Kd)
        k = k_ref[h].astype(jnp.float32)                  # (S, Kd)
        v = v_ref[h].astype(jnp.float32)                  # (S, Kd)
        s = lax.dot_general(q, k, (((1,), (1,)), ((), ())),
                            preferred_element_type=jnp.float32) * scale   # (Sq, Sk)
        s = jnp.where(m > 0.5, s, -jnp.inf)
        s_max = jnp.max(s, axis=-1, keepdims=True)
        p = jnp.exp(s - s_max)
        p = p * (1.0 / jnp.sum(p, axis=-1, keepdims=True))
        ctx = jnp.dot(p, v, preferred_element_type=jnp.float32)           # (Sq, Kd)
        o_ref[:, h * key_size:(h + 1) * key_size] = ctx.astype(o_ref.dtype)


def _attention(q, k, v, key_mask_f32, *, scale):
    # q, k, v: (B, H, S, Kd); key_mask_f32: (B, 1, S) -> out: (B, S, H*Kd)
    B, Hh, S, Kd = q.shape
    kernel = functools.partial(_attn_kernel, scale=float(scale))
    return pl.pallas_call(
        kernel,
        out_shape=jax.ShapeDtypeStruct((B, S, Hh * Kd), q.dtype),
        grid=(B,),
        in_specs=[
            pl.BlockSpec((None, Hh, S, Kd), lambda b: (b, 0, 0, 0)),
            pl.BlockSpec((None, Hh, S, Kd), lambda b: (b, 0, 0, 0)),
            pl.BlockSpec((None, Hh, S, Kd), lambda b: (b, 0, 0, 0)),
            pl.BlockSpec((None, 1, S), lambda b: (b, 0, 0)),
        ],
        out_specs=pl.BlockSpec((None, S, Hh * Kd), lambda b: (b, 0, 0)),
        compiler_params=_cparams("parallel"),
    )(q, k, v, key_mask_f32)


# ---------------------------------------------------------------------------
# Kernel 3: fused output projection + DeepNorm (optional dropout mask, LayerNorm)
# ---------------------------------------------------------------------------
def _proj_deepnorm_kernel(ctx_ref, w_ref, b_ref, x_ref, g_ref, bta_ref, *rest,
                          alpha, eps, with_dropout):
    if with_dropout:
        mask_ref, out_ref = rest
    else:
        (out_ref,) = rest
    post = jnp.dot(ctx_ref[...].astype(jnp.float32), w_ref[...].astype(jnp.float32),
                   preferred_element_type=jnp.float32)
    post = post + b_ref[...].astype(jnp.float32)
    if with_dropout:
        post = post * mask_ref[...].astype(jnp.float32)   # keep/(1-p) scale mask
    y = x_ref[...].astype(jnp.float32) * jnp.float32(alpha) + post
    # fused single-pass moments
    mean = jnp.mean(y, axis=-1, keepdims=True)
    mean_sq = jnp.mean(y * y, axis=-1, keepdims=True)
    var = jnp.maximum(mean_sq - mean * mean, 0.0)
    inv = lax.rsqrt(var + jnp.float32(eps))
    out = (y - mean) * inv * g_ref[...].astype(jnp.float32) + bta_ref[...].astype(jnp.float32)
    out_ref[...] = out.astype(out_ref.dtype)


def _proj_deepnorm(ctx2, w_o, b_o, x2, gamma, ln_beta, *, alpha, eps,
                   drop_mask=None, block_rows=512):
    M, D = ctx2.shape
    H = w_o.shape[1]
    n_row_cols = D + 2 * H + (H if drop_mask is not None else 0)
    tm = _row_tile(M, n_row_cols * 4, block_rows)
    Mp = _round_up(M, tm)
    if Mp != M:
        pad = ((0, Mp - M), (0, 0))
        ctx2 = jnp.pad(ctx2, pad)
        x2 = jnp.pad(x2, pad)
        if drop_mask is not None:
            drop_mask = jnp.pad(drop_mask, pad)
    with_dropout = drop_mask is not None
    kernel = functools.partial(_proj_deepnorm_kernel, alpha=float(alpha),
                               eps=float(eps), with_dropout=with_dropout)
    in_specs = [
        pl.BlockSpec((tm, D), lambda i: (i, 0)),   # attention context rows
        pl.BlockSpec((D, H), lambda i: (0, 0)),    # W_o
        pl.BlockSpec((1, H), lambda i: (0, 0)),    # b_o
        pl.BlockSpec((tm, H), lambda i: (i, 0)),   # residual x rows
        pl.BlockSpec((1, H), lambda i: (0, 0)),    # LN gamma
        pl.BlockSpec((1, H), lambda i: (0, 0)),    # LN beta
    ]
    args = [ctx2, w_o, b_o.reshape(1, H), x2, gamma.reshape(1, H), ln_beta.reshape(1, H)]
    if with_dropout:
        in_specs.append(pl.BlockSpec((tm, H), lambda i: (i, 0)))
        args.append(drop_mask)
    out = pl.pallas_call(
        kernel,
        out_shape=jax.ShapeDtypeStruct((Mp, H), x2.dtype),
        grid=(Mp // tm,),
        in_specs=in_specs,
        out_specs=pl.BlockSpec((tm, H), lambda i: (i, 0)),
        compiler_params=_cparams("parallel"),
    )(*args)
    return out[:M]


# ---------------------------------------------------------------------------
# RoPE (same math as MultiHeadAttn.apply_rope) — interleaved even/odd slicing is
# layout plumbing, done in the wrapper in plain jnp.
# ---------------------------------------------------------------------------
def apply_rope(x, dis):
    half = dis.shape[-1] // 2
    dis_sin, dis_cos = dis[..., :half], dis[..., half:]
    x0, x1 = x[..., 0::2], x[..., 1::2]
    return jnp.concatenate([x0 * dis_cos - x1 * dis_sin,
                            x1 * dis_cos + x0 * dis_sin], axis=-1)


# ---------------------------------------------------------------------------
# Full MultiHeadAttn forward
# ---------------------------------------------------------------------------
def multi_head_attn(x, piq, pik, src_key_padding_mask, params, *, key_size,
                    alpha, dropout_rate=0.0, training=False, rng=None, eps=1e-5):
    B, S, hidden = x.shape
    d = params["w_q"].shape[1]
    n_head = d // key_size
    x2 = x.reshape(B * S, hidden)

    # 1) fused QKV projection (single pass over x)
    w_qkv = jnp.concatenate([params["w_q"], params["w_k"], params["w_v"]], axis=1)
    b_qkv = jnp.concatenate([params["b_q"], params["b_k"], params["b_v"]], axis=0)
    qkv = _linear(x2, w_qkv, b_qkv)
    q = qkv[:, :d].reshape(B, S, n_head, key_size)
    k = qkv[:, d:2 * d].reshape(B, S, n_head, key_size)
    v = qkv[:, 2 * d:].reshape(B, S, n_head, key_size)

    # 2) RoPE
    q = apply_rope(q, piq)
    k = apply_rope(k, pik)

    # 3) attention per batch (all heads in one grid step, context produced
    #    directly in (B, S, d) flatten(2,3) layout)
    qT = jnp.transpose(q, (0, 2, 1, 3))
    kT = jnp.transpose(k, (0, 2, 1, 3))
    vT = jnp.transpose(v, (0, 2, 1, 3))
    key_mask = src_key_padding_mask.reshape(B, S).astype(jnp.float32).reshape(B, 1, S)
    ctx = _attention(qT, kT, vT, key_mask, scale=1.0 / sqrt(key_size))   # (B, S, d)
    ctx2 = ctx.reshape(B * S, d)

    # 4) output projection + DeepNorm (dropout keep-mask built outside the kernel;
    #    in-kernel pltpu.prng_* is not available in the interpret sandbox)
    drop_mask = None
    if training and dropout_rate > 0.0:
        if rng is None:
            rng = jax.random.PRNGKey(0)
        keep = jax.random.bernoulli(rng, 1.0 - dropout_rate, (B * S, hidden))
        drop_mask = keep.astype(jnp.float32) / jnp.float32(1.0 - dropout_rate)
    out2 = _proj_deepnorm(ctx2, params["w_o"], params["b_o"], x2,
                          params["ln_gamma"], params["ln_beta"],
                          alpha=alpha, eps=eps, drop_mask=drop_mask)
    return out2.reshape(B, S, hidden)


# ---------------------------------------------------------------------------
# Pure-JAX reference (eval mode: dropout = identity)
# ---------------------------------------------------------------------------
def multi_head_attn_ref(x, piq, pik, key_mask, params, *, key_size, alpha, eps=1e-5):
    hp = lax.Precision.HIGHEST
    B, S, hidden = x.shape
    d = params["w_q"].shape[1]
    n_head = d // key_size
    q = (jnp.dot(x, params["w_q"], precision=hp) + params["b_q"]).reshape(B, S, n_head, key_size)
    k = (jnp.dot(x, params["w_k"], precision=hp) + params["b_k"]).reshape(B, S, n_head, key_size)
    v = (jnp.dot(x, params["w_v"], precision=hp) + params["b_v"]).reshape(B, S, n_head, key_size)
    q = apply_rope(q, piq)
    k = apply_rope(k, pik)
    attn = jnp.einsum("bnij,bmij->binm", q, k, precision=hp) / sqrt(key_size)
    attn = jnp.where(key_mask.reshape(B, 1, 1, S), attn, -jnp.inf)
    attn = jax.nn.softmax(attn, axis=-1)
    postx = jnp.einsum("binm,bmij->bnij", attn, v, precision=hp).reshape(B, S, d)
    postx = jnp.dot(postx, params["w_o"], precision=hp) + params["b_o"]
    y = x * alpha + postx
    mean = jnp.mean(y, axis=-1, keepdims=True)
    var = jnp.mean((y - mean) ** 2, axis=-1, keepdims=True)
    return (y - mean) / jnp.sqrt(var + eps) * params["ln_gamma"] + params["ln_beta"]


if __name__ == "__main__":
    key = jax.random.PRNGKey(0)
    ks = jax.random.split(key, 16)

    # small but lane-friendly shapes: hidden and head_dim*n_head are multiples of 128
    B, S, hidden = 2, 16, 128
    key_size = 32
    max_charge, n_head_per_mass = 0, 4
    n_head = (2 * max_charge + 1) * n_head_per_mass      # 4 heads
    d = key_size * n_head                                # 128
    alpha = (2.0 * 4) ** 0.25                            # DeepNorm-style residual scale
    beta_gain = 0.7                                      # init gain (affects init only)
    dropout_rate = 0.1

    def xavier(kk, fan_in, fan_out, gain=1.0):
        std = gain * sqrt(2.0 / (fan_in + fan_out))
        return std * jax.random.normal(kk, (fan_in, fan_out), dtype=jnp.float32)

    params = dict(
        w_q=xavier(ks[0], hidden, d), b_q=0.02 * jax.random.normal(ks[1], (d,), jnp.float32),
        w_k=xavier(ks[2], hidden, d), b_k=0.02 * jax.random.normal(ks[3], (d,), jnp.float32),
        w_v=xavier(ks[4], hidden, d, gain=beta_gain),
        b_v=0.02 * jax.random.normal(ks[5], (d,), jnp.float32),
        w_o=xavier(ks[6], d, hidden, gain=beta_gain),
        b_o=0.02 * jax.random.normal(ks[7], (hidden,), jnp.float32),
        ln_gamma=1.0 + 0.1 * jax.random.normal(ks[8], (hidden,), jnp.float32),
        ln_beta=0.1 * jax.random.normal(ks[9], (hidden,), jnp.float32),
    )

    x = jax.random.normal(ks[10], (B, S, hidden), dtype=jnp.float32)
    theta_q = jax.random.uniform(ks[11], (B, S, n_head, key_size // 2),
                                 minval=-3.14, maxval=3.14, dtype=jnp.float32)
    theta_k = jax.random.uniform(ks[12], (B, S, n_head, key_size // 2),
                                 minval=-3.14, maxval=3.14, dtype=jnp.float32)
    piq = jnp.concatenate([jnp.sin(theta_q), jnp.cos(theta_q)], axis=-1)
    pik = jnp.concatenate([jnp.sin(theta_k), jnp.cos(theta_k)], axis=-1)

    # key-padding mask: True = keep; mask out the last 3 key positions of batch 1
    src_key_padding_mask = jnp.ones((B, S), dtype=bool).at[1, S - 3:].set(False)

    # eval-mode forward (dropout identity), checked against the pure-JAX reference
    out = multi_head_attn(x, piq, pik, src_key_padding_mask, params,
                          key_size=key_size, alpha=alpha,
                          dropout_rate=dropout_rate, training=False)
    out = jax.block_until_ready(out)
    ref = multi_head_attn_ref(x, piq, pik, src_key_padding_mask, params,
                              key_size=key_size, alpha=alpha)
    assert jnp.allclose(out, ref, atol=2e-3, rtol=2e-3), "mismatch vs reference"

    # training-mode smoke test (dropout mask built with jax.random, no in-kernel PRNG)
    out_tr = multi_head_attn(x, piq, pik, src_key_padding_mask, params,
                             key_size=key_size, alpha=alpha,
                             dropout_rate=dropout_rate, training=True,
                             rng=jax.random.PRNGKey(123))
    jax.block_until_ready(out_tr)

    print("KERNEL_OK")
</pallas_src>

<mosaic_0001>
module attributes {stable_mosaic.version = 11 : i64} {
  func.func @_linear_kernel(%arg0: i32, %arg1: memref<32x128xf32, #tpu.memory_space<vmem>>, %arg2: memref<128x384xf32, #tpu.memory_space<vmem>>, %arg3: memref<1x384xf32, #tpu.memory_space<vmem>>, %arg4: memref<32x384xf32, #tpu.memory_space<vmem>>) attributes {dimension_semantics = [#tpu.dimension_semantics<parallel>], iteration_bounds = array<i64: 1>, scalar_prefetch = 0 : i64, scratch_operands = 0 : i64, tpu.core_type = #tpu.core_type<tc>, window_params = [{transform_indices = @transform_0, window_bounds = array<i64: 32, 128>}, {pipeline_mode = #tpu.pipeline_mode<synchronous>, transform_indices = @transform_1, window_bounds = array<i64: 128, 384>}, {pipeline_mode = #tpu.pipeline_mode<synchronous>, transform_indices = @transform_2, window_bounds = array<i64: 1, 384>}, {transform_indices = @transform_3, window_bounds = array<i64: 32, 384>}]} {
    %c0 = arith.constant 0 : index
    %c0_0 = arith.constant 0 : index
    %0 = vector.load %arg1[%c0, %c0_0] : memref<32x128xf32, #tpu.memory_space<vmem>>, vector<32x128xf32>
    %c0_1 = arith.constant 0 : index
    %c0_2 = arith.constant 0 : index
    %1 = vector.load %arg2[%c0_1, %c0_2] : memref<128x384xf32, #tpu.memory_space<vmem>>, vector<128x384xf32>
    %cst = arith.constant dense<0.000000e+00> : vector<32x384xf32>
    %2 = tpu.matmul %0, %1, %cst {dimension_numbers = #tpu.dot_dimension_numbers<[1], [0], [0], [1], [0, 0, 1, 1], [], []>} : vector<32x128xf32>, vector<128x384xf32>, vector<32x384xf32> -> vector<32x384xf32>
    %c0_3 = arith.constant 0 : index
    %c0_4 = arith.constant 0 : index
    %3 = vector.load %arg3[%c0_3, %c0_4] : memref<1x384xf32, #tpu.memory_space<vmem>>, vector<1x384xf32>
    %4 = vector.broadcast %3 : vector<1x384xf32> to vector<32x384xf32>
    %5 = arith.addf %2, %4 : vector<32x384xf32>
    %c0_5 = arith.constant 0 : index
    %c0_6 = arith.constant 0 : index
    %6 = vector.load %arg4[%c0_5, %c0_6] : memref<32x384xf32, #tpu.memory_space<vmem>>, vector<32x384xf32>
    tpu.vector_store %arg4[%c0_5, %c0_6], %5 {strides = array<i32>} : memref<32x384xf32, #tpu.memory_space<vmem>>, vector<32x384xf32>,
    return
  }
  func.func @transform_0(%arg0: i32) -> (i32, i32) {
    %c0_i32 = arith.constant 0 : i32
    %c0_i32_0 = arith.constant 0 : i32
    return %arg0, %c0_i32 : i32, i32
  }
  func.func @transform_1(%arg0: i32) -> (i32, i32) {
    %c0_i32 = arith.constant 0 : i32
    %c0_i32_0 = arith.constant 0 : i32
    %c0_i32_1 = arith.constant 0 : i32
    return %c0_i32, %c0_i32_0 : i32, i32
  }
  func.func @transform_2(%arg0: i32) -> (i32, i32) {
    %c0_i32 = arith.constant 0 : i32
    %c0_i32_0 = arith.constant 0 : i32
    %c0_i32_1 = arith.constant 0 : i32
    return %c0_i32, %c0_i32_0 : i32, i32
  }
  func.func @transform_3(%arg0: i32) -> (i32, i32) {
    %c0_i32 = arith.constant 0 : i32
    %c0_i32_0 = arith.constant 0 : i32
    return %arg0, %c0_i32 : i32, i32
  }
}

</mosaic_0001>

<llo_original>
// kernel: tpu_custom_call.1
$region0: #{tpu_custom_call.1}
  #allocation0 [shape = 'u32[]', space=smem, size = 0x4, offset = 0x4, fixed_abs, tag = 'smem constant byte address 0x4 - core index']
  #allocation1 [shape = 'u32[144,128]{1,0:T(1,128)}', space=vmem, size = 0x12000, scoped, tag = 'internal scratch']
  %s0 = inlined_call_operand.hbm [shape: f32[32,128], index: 0, kind: input, shape index: {}]
  %s1 = inlined_call_operand.hbm [shape: f32[128,384], index: 1, kind: input, shape index: {}]
  %s2 = inlined_call_operand.vmem [shape: f32[1,384], index: 2, kind: input, shape index: {}]
  %s3 = inlined_call_operand.hbm [shape: f32[32,384], index: 3, kind: output, shape index: {}]
  %s4 = sld [smem:[#allocation0]]
  $region30: #{tpu_custom_call.1} parent=0
    _
  %s6 = ssub.s32 1, %s4
  %s7 = scalar_select 0, %s6, %s4
  $region1: #{tpu_custom_call.1} parent=0
    #allocation2 [shape = 'u8[16384]{0}', space=vmem, size = 0x4000, scoped, tag = 'input window, operand 0, single buffered']
    #allocation3 [shape = 's32[1]{0}', space=sflag, size = 0x4, scoped, tag = 'scoped memory for tpu_custom_call.1']
    #allocation4 [shape = 's32[1]{0}', space=sflag, size = 0x4, scoped, tag = 'scoped memory for tpu_custom_call.1']
    #allocation5 [shape = 'u8[196608]{0}', space=vmem, size = 0x30000, scoped, tag = 'input window, operand 1, single buffered']
    #allocation6 [shape = 's32[1]{0}', space=sflag, size = 0x4, scoped, tag = 'scoped memory for tpu_custom_call.1']
    #allocation7 [shape = 'u8[49152]{0}', space=vmem, size = 0xc000, scoped, tag = 'output window, operand 0, single buffered']
    %8 = vsyncpa [#allocation3], 0
    %9 = vsyncpa [#allocation6], 0
    %10 = vsyncpa [#allocation4], 0
    // Predicated region
    $region2: #{tpu_custom_call.1} parent=1 // pred_check
      _
    $region3: #{tpu_custom_call.1} parent=1 // pred_check_branch
      %12 = sbr.rel (0) target = $region5
    $region4: #{tpu_custom_call.1} parent=1 // pred_region
      %s14 = ssub.s32 512, 512
      %15 = vsyncadd [#allocation3], %s14
      %s16 = sshll.u32 [#allocation2], 4
      %s17 = int_to_ptr.vmem [resolvable:$true] %s16
      %22 = dma.hbm_to_vmem [thread:$0]  %s0, 512, %s17, [#allocation3], 128, 128, 8
    $region5: #{tpu_custom_call.1} parent=1 // pred_fallthru
      _
    // Predicated region
    $region6: #{tpu_custom_call.1} parent=1 // pred_check
      _
    $region7: #{tpu_custom_call.1} parent=1 // pred_check_branch
      %24 = sbr.rel (0) target = $region9
    $region8: #{tpu_custom_call.1} parent=1 // pred_region
      %s26 = ssub.s32 6144, 6144
      %27 = vsyncadd [#allocation6], %s26
      %s28 = sshll.u32 [#allocation5], 4
      %s29 = int_to_ptr.vmem [resolvable:$true] %s28
      %34 = dma.hbm_to_vmem [thread:$0]  %s1, 6144, %s29, [#allocation6], 384, 384, 24
    $region9: #{tpu_custom_call.1} parent=1 // pred_fallthru
      _
    // Predicated region
    $region10: #{tpu_custom_call.1} parent=1 // pred_check
      _
    $region11: #{tpu_custom_call.1} parent=1 // pred_check_branch
      %36 = sbr.rel (0) target = $region13
    $region12: #{tpu_custom_call.1} parent=1 // pred_region
      _
    $region13: #{tpu_custom_call.1} parent=1 // pred_fallthru
      _
    // Predicated region
    $region14: #{tpu_custom_call.1} parent=1 // pred_check
      _
    $region15: #{tpu_custom_call.1} parent=1 // pred_check_branch
      %38 = sbr.rel (0) target = $region17
    $region16: #{tpu_custom_call.1} parent=1 // pred_region
      %39 = dma.done [#allocation3], 512
    $region17: #{tpu_custom_call.1} parent=1 // pred_fallthru
      _
    // Predicated region
    $region18: #{tpu_custom_call.1} parent=1 // pred_check
      _
    $region19: #{tpu_custom_call.1} parent=1 // pred_check_branch
      %41 = sbr.rel (0) target = $region21
    $region20: #{tpu_custom_call.1} parent=1 // pred_region
      %42 = dma.done [#allocation6], 6144
    $region21: #{tpu_custom_call.1} parent=1 // pred_fallthru
      _
    %v43 = vld [vmem:[#allocation2] sm:$0xff]
    %v44 = vld [vmem:[#allocation2 + $0x8] sm:$0xff]
    %v45 = vld [vmem:[#allocation2 + $0x10] sm:$0xff]
    %v46 = vld [vmem:[#allocation2 + $0x18] sm:$0xff]
    %v47 = vld [vmem:[#allocation5] sm:$0xff]
    %v48 = vld [vmem:[#allocation5 + $0x8] sm:$0xff]
    %v49 = vld [vmem:[#allocation5 + $0x10] sm:$0xff]
    %v50 = vld [vmem:[#allocation5 + $0x18] sm:$0xff]
    %v51 = vld [vmem:[#allocation5 + $0x20] sm:$0xff]
    %v52 = vld [vmem:[#allocation5 + $0x28] sm:$0xff]
    %v53 = vld [vmem:[#allocation5 + $0x30] sm:$0xff]
    %v54 = vld [vmem:[#allocation5 + $0x38] sm:$0xff]
    %v55 = vld [vmem:[#allocation5 + $0x40] sm:$0xff]
    %v56 = vld [vmem:[#allocation5 + $0x48] sm:$0xff]
    %v57 = vld [vmem:[#allocation5 + $0x50] sm:$0xff]
    %v58 = vld [vmem:[#allocation5 + $0x58] sm:$0xff]
    %v59 = vld [vmem:[#allocation5 + $0x60] sm:$0xff]
    %v60 = vld [vmem:[#allocation5 + $0x68] sm:$0xff]
    %v61 = vld [vmem:[#allocation5 + $0x70] sm:$0xff]
    %v62 = vld [vmem:[#allocation5 + $0x78] sm:$0xff]
    %v63 = vld [vmem:[#allocation5 + $0x80] sm:$0xff]
    %v64 = vld [vmem:[#allocation5 + $0x88] sm:$0xff]
    %v65 = vld [vmem:[#allocation5 + $0x90] sm:$0xff]
    %v66 = vld [vmem:[#allocation5 + $0x98] sm:$0xff]
    %v67 = vld [vmem:[#allocation5 + $0xa0] sm:$0xff]
    %v68 = vld [vmem:[#allocation5 + $0xa8] sm:$0xff]
    %v69 = vld [vmem:[#allocation5 + $0xb0] sm:$0xff]
    %v70 = vld [vmem:[#allocation5 + $0xb8] sm:$0xff]
    %v71 = vld [vmem:[#allocation5 + $0xc0] sm:$0xff]
    %v72 = vld [vmem:[#allocation5 + $0xc8] sm:$0xff]
    %v73 = vld [vmem:[#allocation5 + $0xd0] sm:$0xff]
    %v74 = vld [vmem:[#allocation5 + $0xd8] sm:$0xff]
    %v75 = vld [vmem:[#allocation5 + $0xe0] sm:$0xff]
    %v76 = vld [vmem:[#allocation5 + $0xe8] sm:$0xff]
    %v77 = vld [vmem:[#allocation5 + $0xf0] sm:$0xff]
    %v78 = vld [vmem:[#allocation5 + $0xf8] sm:$0xff]
    %v79 = vld [vmem:[#allocation5 + $0x100] sm:$0xff]
    %v80 = vld [vmem:[#allocation5 + $0x108] sm:$0xff]
    %v81 = vld [vmem:[#allocation5 + $0x110] sm:$0xff]
    %v82 = vld [vmem:[#allocation5 + $0x118] sm:$0xff]
    %v83 = vld [vmem:[#allocation5 + $0x120] sm:$0xff]
    %v84 = vld [vmem:[#allocation5 + $0x128] sm:$0xff]
    %v85 = vld [vmem:[#allocation5 + $0x130] sm:$0xff]
    %v86 = vld [vmem:[#allocation5 + $0x138] sm:$0xff]
    %v87 = vld [vmem:[#allocation5 + $0x140] sm:$0xff]
    %v88 = vld [vmem:[#allocation5 + $0x148] sm:$0xff]
    %v89 = vld [vmem:[#allocation5 + $0x150] sm:$0xff]
    %v90 = vld [vmem:[#allocation5 + $0x158] sm:$0xff]
    %v91 = vld [vmem:[#allocation5 + $0x160] sm:$0xff]
    %v92 = vld [vmem:[#allocation5 + $0x168] sm:$0xff]
    %v93 = vld [vmem:[#allocation5 + $0x170] sm:$0xff]
    %v94 = vld [vmem:[#allocation5 + $0x178] sm:$0xff]
    %v95 = vld [vmem:[%s2] sm:$0x7]
    %v97 = vlaneseq
    %v98 = vshrl.u32 %v97, 7
    %v99 = vsub.s32 0, %v98
    %v100 = vrot.slane %v95, %v99
    %v101 = vlaneseq
    %v102 = vshrl.u32 %v101, 7
    %v103 = vsub.s32 1, %v102
    %v104 = vrot.slane %v95, %v103
    %v105 = vlaneseq
    %v106 = vshrl.u32 %v105, 7
    %v107 = vsub.s32 2, %v106
    %v108 = vrot.slane %v95, %v107
    %112 = vmatprep.subr.mxu0 %v48
    %113 = vmatpush1.msra.mxu0 %v47
    %114 = vmatprep.subr.mxu0 %v51
    %115 = vmatpush1.msra.mxu0 %v50
    %116 = vmatprep.subr.mxu0 %v54
    %117 = vmatpush1.msra.mxu0 %v53
    %118 = vmatprep.subr.mxu0 %v57
    %119 = vmatpush1.msra.mxu0 %v56
    %120 = vmatprep.subr.mxu0 %v60
    %121 = vmatpush1.msra.mxu0 %v59
    %122 = vmatprep.subr.mxu0 %v63
    %123 = vmatpush1.msra.mxu0 %v62
    %124 = vmatprep.subr.mxu0 %v66
    %125 = vmatpush1.msra.mxu0 %v65
    %126 = vmatprep.subr.mxu0 %v69
    %127 = vmatpush1.msra.mxu0 %v68
    %128 = vmatprep.subr.mxu0 %v72
    %129 = vmatpush1.msra.mxu0 %v71
    %130 = vmatprep.subr.mxu0 %v75
    %131 = vmatpush1.msra.mxu0 %v74
    %132 = vmatprep.subr.mxu0 %v78
    %133 = vmatpush1.msra.mxu0 %v77
    %134 = vmatprep.subr.mxu0 %v81
    %135 = vmatpush1.msra.mxu0 %v80
    %136 = vmatprep.subr.mxu0 %v84
    %137 = vmatpush1.msra.mxu0 %v83
    %138 = vmatprep.subr.mxu0 %v87
    %139 = vmatpush1.msra.mxu0 %v86
    %140 = vmatprep.subr.mxu0 %v90
    %141 = vmatpush1.msra.mxu0 %v89
    %142 = vmatprep.subr.mxu0 %v93
    %143 = vmatpush1.msra.mxu0 %v92
    %144 = vmatprep.subr.mxu0 0.0
    %145 = vmatpush1.msra.mxu0 0.0
    %146 = vmatprep.subr.mxu0 0.0
    %147 = vmatpush1.msra.mxu0 0.0
    %148 = vmatprep.subr.mxu0 0.0
    %149 = vmatpush1.msra.mxu0 0.0
    %150 = vmatprep.subr.mxu0 0.0
    %151 = vmatpush1.msra.mxu0 0.0
    %152 = vmatprep.subr.mxu0 0.0
    %153 = vmatpush1.msra.mxu0 0.0
    %154 = vmatprep.subr.mxu0 0.0
    %155 = vmatpush1.msra.mxu0 0.0
    %156 = vmatprep.subr.mxu0 0.0
    %157 = vmatpush1.msra.mxu0 0.0
    %158 = vmatprep.subr.mxu0 0.0
    %159 = vmatpush1.msra.mxu0 0.0
    %160 = vmatprep.subr.mxu0 0.0
    %161 = vmatpush1.msra.mxu0 0.0
    %162 = vmatprep.subr.mxu0 0.0
    %163 = vmatpush1.msra.mxu0 0.0
    %164 = vmatprep.subr.mxu0 0.0
    %165 = vmatpush1.msra.mxu0 0.0
    %166 = vmatprep.subr.mxu0 0.0
    %167 = vmatpush1.msra.mxu0 0.0
    %168 = vmatprep.subr.mxu0 0.0
    %169 = vmatpush1.msra.mxu0 0.0
    %170 = vmatprep.subr.mxu0 0.0
    %171 = vmatpush1.msra.mxu0 0.0
    %172 = vmatprep.subr.mxu0 0.0
    %173 = vmatpush1.msra.mxu0 0.0
    %174 = vmatprep.subr.mxu0 0.0
    %175 = vmatpush1.msra.mxu0 0.0
    %176 = vmatprep.mubr.f32.mxu0 0.0
    %177 = vmatmul.mubr.f32.gmra.mrb[0].mxu0 %v43
    %v178 = vpop.f32.mrb[0].mxu0
    %v179 = vadd.f32 %v100, %v178
    %v180 = vpop.f32.mrb[0].mxu0
    %v181 = vadd.f32 %v104, %v180
    %182 = vmatprep.mubr.f32.mxu0 0.0
    %183 = vmatmul.mubr.f32.gmra.mrb[0].mxu0 %v44
    %v184 = vpop.f32.mrb[0].mxu0
    %v185 = vadd.f32 %v100, %v184
    %v186 = vpop.f32.mrb[0].mxu0
    %v187 = vadd.f32 %v104, %v186
    %188 = vmatprep.mubr.f32.mxu0 0.0
    %189 = vmatmul.mubr.f32.gmra.mrb[0].mxu0 %v45
    %v190 = vpop.f32.mrb[0].mxu0
    %v191 = vadd.f32 %v100, %v190
    %v192 = vpop.f32.mrb[0].mxu0
    %v193 = vadd.f32 %v104, %v192
    %194 = vmatprep.mubr.f32.mxu0 0.0
    %195 = vmatmul.mubr.f32.gmra.mrb[0].mxu0 %v46
    %v196 = vpop.f32.mrb[0].mxu0
    %v197 = vadd.f32 %v100, %v196
    %v198 = vpop.f32.mrb[0].mxu0
    %v199 = vadd.f32 %v104, %v198
    %200 = vdwg.mxu0
    %201 = vmatprep.subr.mxu0 0.0
    %202 = vmatpush1.msra.mxu0 %v49
    %203 = vmatprep.subr.mxu0 0.0
    %204 = vmatpush1.msra.mxu0 %v52
    %205 = vmatprep.subr.mxu0 0.0
    %206 = vmatpush1.msra.mxu0 %v55
    %207 = vmatprep.subr.mxu0 0.0
    %208 = vmatpush1.msra.mxu0 %v58
    %209 = vmatprep.subr.mxu0 0.0
    %210 = vmatpush1.msra.mxu0 %v61
    %211 = vmatprep.subr.mxu0 0.0
    %212 = vmatpush1.msra.mxu0 %v64
    %213 = vmatprep.subr.mxu0 0.0
    %214 = vmatpush1.msra.mxu0 %v67
    %215 = vmatprep.subr.mxu0 0.0
    %216 = vmatpush1.msra.mxu0 %v70
    %217 = vmatprep.subr.mxu0 0.0
    %218 = vmatpush1.msra.mxu0 %v73
    %219 = vmatprep.subr.mxu0 0.0
    %220 = vmatpush1.msra.mxu0 %v76
    %221 = vmatprep.subr.mxu0 0.0
    %222 = vmatpush1.msra.mxu0 %v79
    %223 = vmatprep.subr.mxu0 0.0
    %224 = vmatpush1.msra.mxu0 %v82
    %225 = vmatprep.subr.mxu0 0.0
    %226 = vmatpush1.msra.mxu0 %v85
    %227 = vmatprep.subr.mxu0 0.0
    %228 = vmatpush1.msra.mxu0 %v88
    %229 = vmatprep.subr.mxu0 0.0
    %230 = vmatpush1.msra.mxu0 %v91
    %231 = vmatprep.subr.mxu0 0.0
    %232 = vmatpush1.msra.mxu0 %v94
    %233 = vmatprep.subr.mxu0 0.0
    %234 = vmatpush1.msra.mxu0 0.0
    %235 = vmatprep.subr.mxu0 0.0
    %236 = vmatpush1.msra.mxu0 0.0
    %237 = vmatprep.subr.mxu0 0.0
    %238 = vmatpush1.msra.mxu0 0.0
    %239 = vmatprep.subr.mxu0 0.0
    %240 = vmatpush1.msra.mxu0 0.0
    %241 = vmatprep.subr.mxu0 0.0
    %242 = vmatpush1.msra.mxu0 0.0
    %243 = vmatprep.subr.mxu0 0.0
    %244 = vmatpush1.msra.mxu0 0.0
    %245 = vmatprep.subr.mxu0 0.0
    %246 = vmatpush1.msra.mxu0 0.0
    %247 = vmatprep.subr.mxu0 0.0
    %248 = vmatpush1.msra.mxu0 0.0
    %249 = vmatprep.subr.mxu0 0.0
    %250 = vmatpush1.msra.mxu0 0.0
    %251 = vmatprep.subr.mxu0 0.0
    %252 = vmatpush1.msra.mxu0 0.0
    %253 = vmatprep.subr.mxu0 0.0
    %254 = vmatpush1.msra.mxu0 0.0
    %255 = vmatprep.subr.mxu0 0.0
    %256 = vmatpush1.msra.mxu0 0.0
    %257 = vmatprep.subr.mxu0 0.0
    %258 = vmatpush1.msra.mxu0 0.0
    %259 = vmatprep.subr.mxu0 0.0
    %260 = vmatpush1.msra.mxu0 0.0
    %261 = vmatprep.subr.mxu0 0.0
    %262 = vmatpush1.msra.mxu0 0.0
    %263 = vmatprep.subr.mxu0 0.0
    %264 = vmatpush1.msra.mxu0 0.0
    %265 = vmatprep.mubr.f32.mxu0 0.0
    %266 = vmatmul.mubr.f32.gmra.mrb[0].mxu0 %v43
    %v267 = vpop.f32.mrb[0].mxu0
    %v268 = vadd.f32 %v108, %v267
    %v269 = vpop.f32.mrb[0].mxu0
    %270 = vmatprep.mubr.f32.mxu0 0.0
    %271 = vmatmul.mubr.f32.gmra.mrb[0].mxu0 %v44
    %v272 = vpop.f32.mrb[0].mxu0
    %v273 = vadd.f32 %v108, %v272
    %v274 = vpop.f32.mrb[0].mxu0
    %275 = vmatprep.mubr.f32.mxu0 0.0
    %276 = vmatmul.mubr.f32.gmra.mrb[0].mxu0 %v45
    %v277 = vpop.f32.mrb[0].mxu0
    %v278 = vadd.f32 %v108, %v277
    %v279 = vpop.f32.mrb[0].mxu0
    %280 = vmatprep.mubr.f32.mxu0 0.0
    %281 = vmatmul.mubr.f32.gmra.mrb[0].mxu0 %v46
    %v282 = vpop.f32.mrb[0].mxu0
    %v283 = vadd.f32 %v108, %v282
    %v284 = vpop.f32.mrb[0].mxu0
    %285 = vdwg.mxu0
    %286 = vst [vmem:[#allocation7] sm:$0xff] %v179
    %287 = vst [vmem:[#allocation7 + $0x8] sm:$0xff] %v181
    %288 = vst [vmem:[#allocation7 + $0x10] sm:$0xff] %v268
    %289 = vst [vmem:[#allocation7 + $0x18] sm:$0xff] %v185
    %290 = vst [vmem:[#allocation7 + $0x20] sm:$0xff] %v187
    %291 = vst [vmem:[#allocation7 + $0x28] sm:$0xff] %v273
    %292 = vst [vmem:[#allocation7 + $0x30] sm:$0xff] %v191
    %293 = vst [vmem:[#allocation7 + $0x38] sm:$0xff] %v193
    %294 = vst [vmem:[#allocation7 + $0x40] sm:$0xff] %v278
    %295 = vst [vmem:[#allocation7 + $0x48] sm:$0xff] %v197
    %296 = vst [vmem:[#allocation7 + $0x50] sm:$0xff] %v199
    %297 = vst [vmem:[#allocation7 + $0x58] sm:$0xff] %v283
    // Predicated region
    $region22: #{tpu_custom_call.1} parent=1 // pred_check
      _
    $region23: #{tpu_custom_call.1} parent=1 // pred_check_branch
      %299 = sbr.rel (0) target = $region25
    $region24: #{tpu_custom_call.1} parent=1 // pred_region
      %s301 = ssub.s32 1536, 1536
      %302 = vsyncadd [#allocation4], %s301
      %s303 = sshll.u32 [#allocation7], 4
      %s304 = int_to_ptr.vmem [resolvable:$true] %s303
      %309 = dma.vmem_to_hbm [thread:$0]  %s304, 1536, %s3, [#allocation4], 384, 384, 24
    $region25: #{tpu_custom_call.1} parent=1 // pred_fallthru
      _
    // Predicated region
    $region26: #{tpu_custom_call.1} parent=1 // pred_check
      _
    $region27: #{tpu_custom_call.1} parent=1 // pred_check_branch
      %311 = sbr.rel (0) target = $region29
    $region28: #{tpu_custom_call.1} parent=1 // pred_region
      %312 = dma.done [#allocation4], 1536
    $region29: #{tpu_custom_call.1} parent=1 // pred_fallthru
      _
    %313 = vsyncpa [#allocation3], 1
    %314 = vsyncpa [#allocation6], 1
    %315 = vsyncpa [#allocation4], 1

</llo_original>
